<compile_context>
chip_gen: v7x
topology: tpu7x:2x2x1
jax: 0.10.0
libtpu: 0.0.40
codegen_flags: <defaults>
</compile_context>

<pallas_src>
import functools

import jax
import jax.numpy as jnp
from jax import lax
from jax.experimental import pallas as pl
from jax.experimental.pallas import tpu as pltpu

# Below this element count a plain fused XLA op beats kernel-launch + reshape
# overhead.  (Kept small here so the demo exercises the Pallas path; raising
# it toward ~64K elements is reasonable in production.)
_MIN_PALLAS_ELEMENTS = 2048


def _round_up(a: int, m: int) -> int:
    return ((a + m - 1) // m) * m


def _vmem_budget():
    """(target_block_bytes, vmem_limit_bytes) tuned per TPU generation."""
    cap = None
    try:
        cap = getattr(pltpu.get_tpu_info(), "vmem_capacity_bytes", None)
    except Exception:  # interpret mode / unknown target
        cap = None
    if cap is None:
        return 4 << 20, 32 << 20          # safe everywhere
    if cap >= (100 << 20):                # v5e / v6e: 128 MiB physical VMEM
        return 12 << 20, 64 << 20         # 2 bufs x (in+out) x 12 MiB = 48 MiB
    return 6 << 20, 40 << 20              # v7x-class: 64 MiB physical VMEM


def _apply_activation(x, activation_type: str, approximate: bool = False):
    if activation_type == "relu":
        return jnp.maximum(x, jnp.zeros((), x.dtype))

    # gelu / silu: f32 op-math (matches PyTorch's internal upcast for half
    # dtypes; no-op for f32).  Memory-bound kernel -> upcast is free.
    xf = x.astype(jnp.float32)
    if activation_type == "gelu":
        if approximate:
            # tanh-form GELU (EUP tanh) -- opt-in; default stays exact erf.
            c = 0.7978845608028654  # sqrt(2/pi)
            out = 0.5 * xf * (1.0 + jnp.tanh(c * (xf + 0.044715 * xf * xf * xf)))
        else:
            out = 0.5 * xf * (1.0 + lax.erf(xf * 0.7071067811865476))
    elif activation_type == "silu":
        out = xf * jax.nn.sigmoid(xf)
    else:
        raise ValueError(f"unsupported activation_type: {activation_type}")
    return out.astype(x.dtype)


def _activation_kernel(x_ref, o_ref, *, activation_type: str, approximate: bool):
    o_ref[...] = _apply_activation(x_ref[...], activation_type, approximate)


def activation(x, activation_type: str = "relu", *, approximate_gelu: bool = False,
               donate_input: bool = False):
    """Elementwise activation via a Pallas TPU kernel (matches torch semantics).

    donate_input=True aliases the kernel input buffer to the output
    (input_output_aliases={0: 0}).  Only use it when the caller no longer
    needs `x` (the reshape into the kernel is typically a no-copy view).
    """
    if activation_type not in ("relu", "gelu", "silu"):
        raise ValueError(f"unsupported activation_type: {activation_type}")

    orig_shape = x.shape
    dtype = x.dtype
    n = x.size
    if n == 0:
        return x

    # Tiny-input fast path: a fused XLA elementwise op beats kernel launch.
    if n < _MIN_PALLAS_ELEMENTS:
        return _apply_activation(x, activation_type, approximate_gelu)

    itemsize = dtype.itemsize
    # Sublane packing: 8 rows for 32-bit, 16 for bf16/f16, 32 for 8-bit.
    row_pack = max(8, 32 // max(1, itemsize))

    # Widest lane count that divides n -> reshape is free, no pad / slice.
    cols = None
    for c in (1024, 512, 256, 128):
        if n % c == 0:
            cols = c
            break
    if cols is None:
        # n % 128 != 0: minimal pad fallback (one extra copy in + slice out).
        # Zero-padding is safe because relu/gelu/silu all map 0 -> 0 and the
        # padded tail is sliced off below; revisit if new activations are
        # added or if the output buffer is ever aliased/donated upstream.
        cols = 1024
        padded_n = _round_up(n, cols)
    else:
        padded_n = n

    rows = padded_n // cols

    target_block_bytes, vmem_limit = _vmem_budget()
    target_rows = max(
        row_pack, (target_block_bytes // (cols * itemsize)) // row_pack * row_pack
    )

    if rows <= row_pack:
        tile = rows                        # single block == full array
    elif rows <= 2 * target_rows:
        # Split into (at most) 2 balanced blocks so both v7x TCs get work.
        tile = _round_up(pl.cdiv(rows, 2), row_pack)
    else:
        tile = target_rows                 # big streaming blocks
    grid = (pl.cdiv(rows, tile),)          # partial last block is write-masked

    flat = x.reshape(-1)
    if padded_n != n:
        flat = jnp.pad(flat, (0, padded_n - n))
    x2d = flat.reshape(rows, cols)

    kernel = functools.partial(
        _activation_kernel, activation_type=activation_type,
        approximate=approximate_gelu)

    out2d = pl.pallas_call(
        kernel,
        out_shape=jax.ShapeDtypeStruct((rows, cols), dtype),
        grid_spec=pltpu.PrefetchScalarGridSpec(
            num_scalar_prefetch=0,
            grid=grid,
            in_specs=[pl.BlockSpec((tile, cols), lambda i: (i, 0))],
            out_specs=pl.BlockSpec((tile, cols), lambda i: (i, 0)),
        ),
        compiler_params=pltpu.CompilerParams(
            dimension_semantics=("parallel",),   # megacore / 2-TC sharding
            vmem_limit_bytes=vmem_limit,
        ),
        input_output_aliases=({0: 0} if donate_input else {}),
    )(x2d)

    out = out2d.reshape(-1)
    if padded_n != n:
        out = out[:n]
    return out.reshape(orig_shape)


def _reference(x, activation_type):
    xf = x.astype(jnp.float32)
    if activation_type == "relu":
        out = jnp.maximum(xf, 0.0)
    elif activation_type == "gelu":
        out = 0.5 * xf * (1.0 + lax.erf(xf / jnp.sqrt(2.0)))
    else:
        out = xf * jax.nn.sigmoid(xf)
    return out.astype(x.dtype)


if __name__ == "__main__":
    key = jax.random.PRNGKey(0)
    keys = jax.random.split(key, 5)
    test_cases = [
        # (input, atol, rtol)
        (jax.random.normal(keys[0], (2, 4, 16, 16), jnp.float32), 1e-5, 1e-5),  # n=2048: cols=1024 kernel path
        (jax.random.normal(keys[1], (2, 3, 12, 64), jnp.float32), 1e-5, 1e-5),  # n=4608: cols=512, partial last block
        (jax.random.normal(keys[2], (3, 5, 13, 17), jnp.float32), 1e-5, 1e-5),  # n=3315: n%128!=0 pad fallback
        (jax.random.normal(keys[3], (3, 5, 7, 11), jnp.float32), 1e-5, 1e-5),   # n=1155: tiny fast path
        (jax.random.normal(keys[4], (8, 4, 32, 32), jnp.float32).astype(jnp.bfloat16), 5e-2, 2e-2),  # bf16
    ]

    ok = True
    for x, atol, rtol in test_cases:
        for act in ("relu", "gelu", "silu"):
            out = activation(x, activation_type=act)
            jax.block_until_ready(out)
            ref = _reference(x, act)
            if out.shape != x.shape or out.dtype != x.dtype:
                ok = False
            if not jnp.allclose(out.astype(jnp.float32), ref.astype(jnp.float32),
                                atol=atol, rtol=rtol):
                ok = False

    if ok:
        print("KERNEL_OK")
</pallas_src>

<mosaic_0001>
module attributes {stable_mosaic.version = 11 : i64} {
  func.func @_activation_kernel(%arg0: i32, %arg1: memref<2x1024xf32, #tpu.memory_space<vmem>>, %arg2: memref<2x1024xf32, #tpu.memory_space<vmem>>) attributes {dimension_semantics = [#tpu.dimension_semantics<parallel>], iteration_bounds = array<i64: 1>, scalar_prefetch = 0 : i64, scratch_operands = 0 : i64, tpu.core_type = #tpu.core_type<tc>, window_params = [{transform_indices = @transform_0, window_bounds = array<i64: 2, 1024>}, {transform_indices = @transform_1, window_bounds = array<i64: 2, 1024>}]} {
    %c0 = arith.constant 0 : index
    %c0_0 = arith.constant 0 : index
    %0 = vector.load %arg1[%c0, %c0_0] : memref<2x1024xf32, #tpu.memory_space<vmem>>, vector<2x1024xf32>
    %cst = arith.constant 0.000000e+00 : f32
    %1 = vector.broadcast %cst : f32 to vector<2x1024xf32>
    %2 = arith.maximumf %0, %1 : vector<2x1024xf32>
    %c0_1 = arith.constant 0 : index
    %c0_2 = arith.constant 0 : index
    %3 = vector.load %arg2[%c0_1, %c0_2] : memref<2x1024xf32, #tpu.memory_space<vmem>>, vector<2x1024xf32>
    tpu.vector_store %arg2[%c0_1, %c0_2], %2 {strides = array<i32>} : memref<2x1024xf32, #tpu.memory_space<vmem>>, vector<2x1024xf32>,
    return
  }
  func.func @transform_0(%arg0: i32) -> (i32, i32) {
    %c0_i32 = arith.constant 0 : i32
    %c0_i32_0 = arith.constant 0 : i32
    return %arg0, %c0_i32 : i32, i32
  }
  func.func @transform_1(%arg0: i32) -> (i32, i32) {
    %c0_i32 = arith.constant 0 : i32
    %c0_i32_0 = arith.constant 0 : i32
    return %arg0, %c0_i32 : i32, i32
  }
}

</mosaic_0001>

<llo_original>
// kernel: tpu_custom_call.1
$region0: #{tpu_custom_call.1}
  #allocation0 [shape = 'u32[]', space=smem, size = 0x4, offset = 0x4, fixed_abs, tag = 'smem constant byte address 0x4 - core index']
  #allocation1 [shape = 'u32[144,128]{1,0:T(1,128)}', space=vmem, size = 0x12000, scoped, tag = 'internal scratch']
  %s0 = inlined_call_operand.hbm [shape: f32[2,1024], index: 0, kind: input, shape index: {}]
  %s1 = inlined_call_operand.hbm [shape: f32[2,1024], index: 1, kind: output, shape index: {}]
  %s2 = sld [smem:[#allocation0]]
  $region18: #{tpu_custom_call.1} parent=0
    _
  %s4 = ssub.s32 1, %s2
  %s5 = scalar_select 0, %s4, %s2
  $region1: #{tpu_custom_call.1} parent=0
    #allocation2 [shape = 'u8[8192]{0}', space=vmem, size = 0x2000, scoped, tag = 'input window, operand 0, single buffered']
    #allocation3 [shape = 's32[1]{0}', space=sflag, size = 0x4, scoped, tag = 'scoped memory for tpu_custom_call.1']
    #allocation4 [shape = 's32[1]{0}', space=sflag, size = 0x4, scoped, tag = 'scoped memory for tpu_custom_call.1']
    #allocation5 [shape = 'u8[8192]{0}', space=vmem, size = 0x2000, scoped, tag = 'output window, operand 0, single buffered']
    %6 = vsyncpa [#allocation3], 0
    %7 = vsyncpa [#allocation4], 0
    // Predicated region
    $region2: #{tpu_custom_call.1} parent=1 // pred_check
      _
    $region3: #{tpu_custom_call.1} parent=1 // pred_check_branch
      %9 = sbr.rel (0) target = $region5
    $region4: #{tpu_custom_call.1} parent=1 // pred_region
      %s11 = ssub.s32 256, 256
      %12 = vsyncadd [#allocation3], %s11
      %s14 = sshll.u32 [#allocation2], 4
      %s15 = int_to_ptr.vmem [resolvable:$true] %s14
      %17 = dma.hbm_to_vmem [thread:$0]  %s0, 256, %s15, [#allocation3]
    $region5: #{tpu_custom_call.1} parent=1 // pred_fallthru
      _
    // Predicated region
    $region6: #{tpu_custom_call.1} parent=1 // pred_check
      _
    $region7: #{tpu_custom_call.1} parent=1 // pred_check_branch
      %19 = sbr.rel (0) target = $region9
    $region8: #{tpu_custom_call.1} parent=1 // pred_region
      %20 = dma.done [#allocation3], 256
    $region9: #{tpu_custom_call.1} parent=1 // pred_fallthru
      _
    %v21 = vld [vmem:[#allocation2] sm:$0xff]
    %v22 = vld [vmem:[#allocation2 + $0x8] sm:$0xff]
    %v23 = vmax.f32 %v21, 0.0
    %v24 = vmax.f32 %v22, 0.0
    %25 = vst [vmem:[#allocation5] sm:$0xff] %v23
    %26 = vst [vmem:[#allocation5 + $0x8] sm:$0xff] %v24
    // Predicated region
    $region10: #{tpu_custom_call.1} parent=1 // pred_check
      _
    $region11: #{tpu_custom_call.1} parent=1 // pred_check_branch
      %28 = sbr.rel (0) target = $region13
    $region12: #{tpu_custom_call.1} parent=1 // pred_region
      %s30 = ssub.s32 256, 256
      %31 = vsyncadd [#allocation4], %s30
      %s33 = sshll.u32 [#allocation5], 4
      %s34 = int_to_ptr.vmem [resolvable:$true] %s33
      %36 = dma.vmem_to_hbm [thread:$0]  %s34, 256, %s1, [#allocation4]
    $region13: #{tpu_custom_call.1} parent=1 // pred_fallthru
      _
    // Predicated region
    $region14: #{tpu_custom_call.1} parent=1 // pred_check
      _
    $region15: #{tpu_custom_call.1} parent=1 // pred_check_branch
      %38 = sbr.rel (0) target = $region17
    $region16: #{tpu_custom_call.1} parent=1 // pred_region
      %39 = dma.done [#allocation4], 256
    $region17: #{tpu_custom_call.1} parent=1 // pred_fallthru
      _
    %40 = vsyncpa [#allocation3], 1
    %41 = vsyncpa [#allocation4], 1

</llo_original>
